<compile_context>
chip_gen: v6e
topology: v6e:2x2x1
jax: 0.10.0
libtpu: 0.0.40
codegen_flags: <defaults>
</compile_context>

<pallas_src>
import functools

import jax
import jax.numpy as jnp
from jax.experimental import pallas as pl
from jax.experimental.pallas import tpu as pltpu

DROPOUT_CONSTANT = 0.1
EPSILON = 1e-7


def _fused_residual_kernel(x_ref, w_ref, bias_ref, gamma_ref, beta_ref, *rest,
                           p, eps):
    """One block of rows: o = x + dropout(LayerNorm(x @ W + bias))."""
    if p > 0.0:
        bits_ref, o_ref = rest
    else:
        (o_ref,) = rest

    x = x_ref[...].astype(jnp.float32)

    # Fused networkLayer (Linear): MXU matmul, f32 accumulation.
    y = jnp.dot(x_ref[...], w_ref[...],
                preferred_element_type=jnp.float32) + bias_ref[...]

    d = y.shape[-1]
    mean = jnp.mean(y, axis=-1, keepdims=True)
    centered = y - mean
    # torch.Tensor.std default = UNBIASED estimator (divide by N-1).
    var_unbiased = jnp.sum(centered * centered, axis=-1, keepdims=True) * (
        1.0 / (d - 1))
    std = jnp.sqrt(var_unbiased)
    inv = 1.0 / (std + eps)                      # one divide per ROW, not per element
    normed = centered * inv * gamma_ref[...] + beta_ref[...]

    if p > 0.0:
        # Integer-domain compare: keep element iff uniform >= p.
        threshold = jnp.uint32(min(int(p * (2.0 ** 32)), 2 ** 32 - 1))
        keep = bits_ref[...] >= threshold
        dropped = jnp.where(keep, normed * (1.0 / (1.0 - p)), 0.0)
    else:
        dropped = normed

    o_ref[...] = (x + dropped).astype(o_ref.dtype)


def residual_connection(x, W, bias, gamma, beta, *,
                        p=DROPOUT_CONSTANT, eps=EPSILON,
                        dropout_bits=None, block_rows=None):
    """x: (B, S, D); W: (D, D); bias/gamma/beta: (D,).

    dropout_bits: uint32 array of shape (B, S, D) (required when p > 0).
    Returns (B, S, D) = x + dropout(LayerNorm(x @ W + bias)).
    """
    # TODO(synk): only a Linear networkLayer is fused here; an arbitrary
    # networkLayer module would be applied in plain JAX and streamed in instead.
    B, S, D = x.shape
    R = B * S

    x2 = x.reshape(R, D)
    bias2 = bias.reshape(1, D).astype(jnp.float32)
    g2 = gamma.reshape(1, D).astype(jnp.float32)
    b2 = beta.reshape(1, D).astype(jnp.float32)
    W = W.astype(x.dtype)

    n_streamed = 3 if p > 0.0 else 2          # x, (bits), out
    sublane = 16 if x.dtype == jnp.bfloat16 else 8

    if block_rows is None:
        # Size the streamed, double-buffered tiles against a ~32 MiB budget so
        # the kernel is safe on v7x (64 MiB VMEM/TC) and still near the HBM
        # roofline on v5e/v6e.
        budget = 32 * 1024 * 1024
        per_row_bytes = D * 4
        max_rows = max(sublane, budget // (2 * n_streamed * per_row_bytes))
        block_rows = int(min(R, (max_rows // sublane) * sublane, 1024))
    block_rows = max(1, min(block_rows, R))

    grid = (pl.cdiv(R, block_rows),)

    in_specs = [
        pl.BlockSpec((block_rows, D), lambda i: (i, 0)),   # x (streamed)
        pl.BlockSpec((D, D), lambda i: (0, 0)),            # W (resident)
        pl.BlockSpec((1, D), lambda i: (0, 0)),            # bias (resident)
        pl.BlockSpec((1, D), lambda i: (0, 0)),            # gamma (resident)
        pl.BlockSpec((1, D), lambda i: (0, 0)),            # beta (resident)
    ]
    operands = [x2, W, bias2, g2, b2]

    if p > 0.0:
        if dropout_bits is None:
            raise ValueError("dropout_bits (uint32, shape (B,S,D)) required when p > 0")
        bits2 = dropout_bits.reshape(R, D).astype(jnp.uint32)
        in_specs.append(pl.BlockSpec((block_rows, D), lambda i: (i, 0)))
        operands.append(bits2)

    # Scoped-VMEM request: double-buffered streamed tiles + resident W/params.
    est_vmem = (2 * n_streamed * block_rows * D * 4
                + 2 * D * D * 4 + 6 * D * 4 + (2 << 20))
    vmem_limit = int(min(96 * 1024 * 1024, max(32 * 1024 * 1024, est_vmem)))

    cost = pl.CostEstimate(
        flops=2 * R * D * D + 12 * R * D,
        transcendentals=R,
        bytes_accessed=n_streamed * R * D * 4 + D * D * 4 + 3 * D * 4,
    )

    kernel = functools.partial(_fused_residual_kernel, p=p, eps=eps)

    out = pl.pallas_call(
        kernel,
        out_shape=jax.ShapeDtypeStruct((R, D), x.dtype),
        grid=grid,
        in_specs=in_specs,
        out_specs=pl.BlockSpec((block_rows, D), lambda i: (i, 0)),
        compiler_params=pltpu.CompilerParams(
            dimension_semantics=("parallel",),     # row blocks are independent
            vmem_limit_bytes=vmem_limit),
        cost_estimate=cost,
    )(*operands)

    return out.reshape(B, S, D)


if __name__ == "__main__":
    key = jax.random.PRNGKey(0)
    kx, kw, kb, kd = jax.random.split(key, 4)

    # (batch, seq, hidden); hidden kept lane-dense (multiple of 128).
    B, S, D = 2, 8, 128
    x = jax.random.normal(kx, (B, S, D), dtype=jnp.float32)

    # Deterministic synthetic networkLayer: Linear(D -> D), fused into the kernel.
    W = 0.1 * jax.random.normal(kw, (D, D), dtype=jnp.float32)
    bias = 0.1 * jax.random.normal(kb, (D,), dtype=jnp.float32)

    # LayerNormalization parameters (as initialized in __init__).
    gamma = jnp.ones((D,), jnp.float32)
    beta = jnp.zeros((D,), jnp.float32)

    # Pure-JAX reference of LayerNorm(networkLayer(x)) with module numerics.
    y = x @ W + bias
    mean = jnp.mean(y, axis=-1, keepdims=True)
    std = jnp.std(y, axis=-1, keepdims=True, ddof=1)   # unbiased, matches torch .std()
    normed = gamma * (y - mean) / (std + EPSILON) + beta

    # Eval-mode check (dropout disabled).
    out0 = residual_connection(x, W, bias, gamma, beta, p=0.0)
    ref0 = x + normed
    assert jnp.allclose(out0, ref0, atol=1e-3, rtol=1e-3), "mismatch (p=0)"

    # Train-mode check with an explicit dropout bit-stream (exact reference).
    bits = jax.random.bits(kd, (B, S, D), dtype=jnp.uint32)
    out1 = residual_connection(x, W, bias, gamma, beta,
                               p=DROPOUT_CONSTANT, dropout_bits=bits)
    thr = jnp.uint32(int(DROPOUT_CONSTANT * (2.0 ** 32)))
    keep = bits >= thr
    ref1 = x + jnp.where(keep, normed / (1.0 - DROPOUT_CONSTANT), 0.0)
    assert jnp.allclose(out1, ref1, atol=1e-3, rtol=1e-3), "mismatch (p=0.1)"

    jax.block_until_ready(out1)
    assert out1.shape == (B, S, D)
    print("KERNEL_OK")
</pallas_src>

<mosaic_0001>
module attributes {stable_mosaic.version = 11 : i64} {
  func.func @_fused_residual_kernel(%arg0: i32, %arg1: memref<16x128xf32, #tpu.memory_space<vmem>>, %arg2: memref<128x128xf32, #tpu.memory_space<vmem>>, %arg3: memref<1x128xf32, #tpu.memory_space<vmem>>, %arg4: memref<1x128xf32, #tpu.memory_space<vmem>>, %arg5: memref<1x128xf32, #tpu.memory_space<vmem>>, %arg6: memref<16x128xf32, #tpu.memory_space<vmem>>) attributes {dimension_semantics = [#tpu.dimension_semantics<parallel>], iteration_bounds = array<i64: 1>, scalar_prefetch = 0 : i64, scratch_operands = 0 : i64, tpu.core_type = #tpu.core_type<tc>, window_params = [{transform_indices = @transform_0, window_bounds = array<i64: 16, 128>}, {pipeline_mode = #tpu.pipeline_mode<synchronous>, transform_indices = @transform_1, window_bounds = array<i64: 128, 128>}, {pipeline_mode = #tpu.pipeline_mode<synchronous>, transform_indices = @transform_2, window_bounds = array<i64: 1, 128>}, {pipeline_mode = #tpu.pipeline_mode<synchronous>, transform_indices = @transform_3, window_bounds = array<i64: 1, 128>}, {pipeline_mode = #tpu.pipeline_mode<synchronous>, transform_indices = @transform_4, window_bounds = array<i64: 1, 128>}, {transform_indices = @transform_5, window_bounds = array<i64: 16, 128>}]} {
    %c0 = arith.constant 0 : index
    %c0_0 = arith.constant 0 : index
    %0 = vector.load %arg1[%c0, %c0_0] : memref<16x128xf32, #tpu.memory_space<vmem>>, vector<16x128xf32>
    %c0_1 = arith.constant 0 : index
    %c0_2 = arith.constant 0 : index
    %1 = vector.load %arg1[%c0_1, %c0_2] : memref<16x128xf32, #tpu.memory_space<vmem>>, vector<16x128xf32>
    %c0_3 = arith.constant 0 : index
    %c0_4 = arith.constant 0 : index
    %2 = vector.load %arg2[%c0_3, %c0_4] : memref<128x128xf32, #tpu.memory_space<vmem>>, vector<128x128xf32>
    %cst = arith.constant dense<0.000000e+00> : vector<16x128xf32>
    %3 = tpu.matmul %1, %2, %cst {dimension_numbers = #tpu.dot_dimension_numbers<[1], [0], [0], [1], [0, 0, 1, 1], [], []>} : vector<16x128xf32>, vector<128x128xf32>, vector<16x128xf32> -> vector<16x128xf32>
    %c0_5 = arith.constant 0 : index
    %c0_6 = arith.constant 0 : index
    %4 = vector.load %arg3[%c0_5, %c0_6] : memref<1x128xf32, #tpu.memory_space<vmem>>, vector<1x128xf32>
    %5 = vector.broadcast %4 : vector<1x128xf32> to vector<16x128xf32>
    %6 = arith.addf %3, %5 : vector<16x128xf32>
    %cst_7 = arith.constant dense<0.000000e+00> : vector<16xf32>
    %7 = vector.multi_reduction <add>, %6, %cst_7 [1] : vector<16x128xf32> to vector<16xf32>
    %8 = vector.shape_cast %7 : vector<16xf32> to vector<16x1xf32>
    %cst_8 = arith.constant 1.280000e+02 : f32
    %9 = vector.broadcast %cst_8 : f32 to vector<16x1xf32>
    %10 = arith.divf %8, %9 : vector<16x1xf32>
    %11 = vector.broadcast %10 : vector<16x1xf32> to vector<16x128xf32>
    %12 = arith.subf %6, %11 : vector<16x128xf32>
    %13 = arith.mulf %12, %12 : vector<16x128xf32>
    %cst_9 = arith.constant dense<0.000000e+00> : vector<16xf32>
    %14 = vector.multi_reduction <add>, %13, %cst_9 [1] : vector<16x128xf32> to vector<16xf32>
    %15 = vector.shape_cast %14 : vector<16xf32> to vector<16x1xf32>
    %cst_10 = arith.constant 0.00787401571 : f32
    %16 = vector.broadcast %cst_10 : f32 to vector<16x1xf32>
    %17 = arith.mulf %15, %16 : vector<16x1xf32>
    %18 = math.sqrt %17 : vector<16x1xf32>
    %cst_11 = arith.constant 1.000000e-07 : f32
    %19 = vector.broadcast %cst_11 : f32 to vector<16x1xf32>
    %20 = arith.addf %18, %19 : vector<16x1xf32>
    %cst_12 = arith.constant 1.000000e+00 : f32
    %21 = vector.broadcast %cst_12 : f32 to vector<16x1xf32>
    %22 = arith.divf %21, %20 : vector<16x1xf32>
    %23 = vector.broadcast %22 : vector<16x1xf32> to vector<16x128xf32>
    %24 = arith.mulf %12, %23 : vector<16x128xf32>
    %c0_13 = arith.constant 0 : index
    %c0_14 = arith.constant 0 : index
    %25 = vector.load %arg4[%c0_13, %c0_14] : memref<1x128xf32, #tpu.memory_space<vmem>>, vector<1x128xf32>
    %26 = vector.broadcast %25 : vector<1x128xf32> to vector<16x128xf32>
    %27 = arith.mulf %24, %26 : vector<16x128xf32>
    %c0_15 = arith.constant 0 : index
    %c0_16 = arith.constant 0 : index
    %28 = vector.load %arg5[%c0_15, %c0_16] : memref<1x128xf32, #tpu.memory_space<vmem>>, vector<1x128xf32>
    %29 = vector.broadcast %28 : vector<1x128xf32> to vector<16x128xf32>
    %30 = arith.addf %27, %29 : vector<16x128xf32>
    %31 = arith.addf %0, %30 : vector<16x128xf32>
    %c0_17 = arith.constant 0 : index
    %c0_18 = arith.constant 0 : index
    %32 = vector.load %arg6[%c0_17, %c0_18] : memref<16x128xf32, #tpu.memory_space<vmem>>, vector<16x128xf32>
    tpu.vector_store %arg6[%c0_17, %c0_18], %31 {strides = array<i32>} : memref<16x128xf32, #tpu.memory_space<vmem>>, vector<16x128xf32>,
    return
  }
  func.func @transform_0(%arg0: i32) -> (i32, i32) {
    %c0_i32 = arith.constant 0 : i32
    %c0_i32_0 = arith.constant 0 : i32
    return %arg0, %c0_i32 : i32, i32
  }
  func.func @transform_1(%arg0: i32) -> (i32, i32) {
    %c0_i32 = arith.constant 0 : i32
    %c0_i32_0 = arith.constant 0 : i32
    %c0_i32_1 = arith.constant 0 : i32
    return %c0_i32, %c0_i32_0 : i32, i32
  }
  func.func @transform_2(%arg0: i32) -> (i32, i32) {
    %c0_i32 = arith.constant 0 : i32
    %c0_i32_0 = arith.constant 0 : i32
    %c0_i32_1 = arith.constant 0 : i32
    return %c0_i32, %c0_i32_0 : i32, i32
  }
  func.func @transform_3(%arg0: i32) -> (i32, i32) {
    %c0_i32 = arith.constant 0 : i32
    %c0_i32_0 = arith.constant 0 : i32
    %c0_i32_1 = arith.constant 0 : i32
    return %c0_i32, %c0_i32_0 : i32, i32
  }
  func.func @transform_4(%arg0: i32) -> (i32, i32) {
    %c0_i32 = arith.constant 0 : i32
    %c0_i32_0 = arith.constant 0 : i32
    %c0_i32_1 = arith.constant 0 : i32
    return %c0_i32, %c0_i32_0 : i32, i32
  }
  func.func @transform_5(%arg0: i32) -> (i32, i32) {
    %c0_i32 = arith.constant 0 : i32
    %c0_i32_0 = arith.constant 0 : i32
    return %arg0, %c0_i32 : i32, i32
  }
}

</mosaic_0001>

<llo_original>
// kernel: tpu_custom_call.1
$region0: #{tpu_custom_call.1}
  #allocation0 [shape = 'u32[]', space=smem, size = 0x4, offset = 0x4, fixed_abs, tag = 'smem constant byte address 0x4 - core index']
  #allocation1 [shape = 'u32[144,128]{1,0:T(1,128)}', space=vmem, size = 0x12000, scoped, tag = 'internal scratch']
  %s0 = inlined_call_operand.hbm [shape: f32[16,128], index: 0, kind: input, shape index: {}]
  %s1 = inlined_call_operand.hbm [shape: f32[128,128], index: 1, kind: input, shape index: {}]
  %s2 = inlined_call_operand.vmem [shape: f32[1,128], index: 2, kind: input, shape index: {}]
  %s3 = inlined_call_operand.vmem [shape: f32[1,128], index: 3, kind: input, shape index: {}]
  %s4 = inlined_call_operand.vmem [shape: f32[1,128], index: 4, kind: input, shape index: {}]
  %s5 = inlined_call_operand.hbm [shape: f32[16,128], index: 5, kind: output, shape index: {}]
  %s6 = sld [smem:[#allocation0]]
  $region38: #{tpu_custom_call.1} parent=0
    _
  %s8 = ssub.s32 1, %s6
  %s9 = scalar_select 0, %s8, %s6
  $region1: #{tpu_custom_call.1} parent=0
    #allocation2 [shape = 'u8[8192]{0}', space=vmem, size = 0x2000, scoped, tag = 'input window, operand 0, single buffered']
    #allocation3 [shape = 's32[1]{0}', space=sflag, size = 0x4, scoped, tag = 'scoped memory for tpu_custom_call.1']
    #allocation4 [shape = 's32[1]{0}', space=sflag, size = 0x4, scoped, tag = 'scoped memory for tpu_custom_call.1']
    #allocation5 [shape = 'u8[65536]{0}', space=vmem, size = 0x10000, scoped, tag = 'input window, operand 1, single buffered']
    #allocation6 [shape = 's32[1]{0}', space=sflag, size = 0x4, scoped, tag = 'scoped memory for tpu_custom_call.1']
    #allocation7 [shape = 'u8[8192]{0}', space=vmem, size = 0x2000, scoped, tag = 'output window, operand 0, single buffered']
    %10 = vsyncpa [#allocation3], 0
    %11 = vsyncpa [#allocation6], 0
    %12 = vsyncpa [#allocation4], 0
    // Predicated region
    $region2: #{tpu_custom_call.1} parent=1 // pred_check
      _
    $region3: #{tpu_custom_call.1} parent=1 // pred_check_branch
      %14 = sbr.rel (0) target = $region5
    $region4: #{tpu_custom_call.1} parent=1 // pred_region
      %s16 = ssub.s32 256, 256
      %17 = vsyncadd [#allocation3], %s16
      %s18 = sshll.u32 [#allocation2], 4
      %s19 = int_to_ptr.vmem [resolvable:$true] %s18
      %24 = dma.hbm_to_vmem [thread:$0]  %s0, 256, %s19, [#allocation3], 128, 128, 8
    $region5: #{tpu_custom_call.1} parent=1 // pred_fallthru
      _
    // Predicated region
    $region6: #{tpu_custom_call.1} parent=1 // pred_check
      _
    $region7: #{tpu_custom_call.1} parent=1 // pred_check_branch
      %26 = sbr.rel (0) target = $region9
    $region8: #{tpu_custom_call.1} parent=1 // pred_region
      %s28 = ssub.s32 2048, 2048
      %29 = vsyncadd [#allocation6], %s28
      %s30 = sshll.u32 [#allocation5], 4
      %s31 = int_to_ptr.vmem [resolvable:$true] %s30
      %36 = dma.hbm_to_vmem [thread:$0]  %s1, 2048, %s31, [#allocation6], 128, 128, 8
    $region9: #{tpu_custom_call.1} parent=1 // pred_fallthru
      _
    // Predicated region
    $region10: #{tpu_custom_call.1} parent=1 // pred_check
      _
    $region11: #{tpu_custom_call.1} parent=1 // pred_check_branch
      %38 = sbr.rel (0) target = $region13
    $region12: #{tpu_custom_call.1} parent=1 // pred_region
      _
    $region13: #{tpu_custom_call.1} parent=1 // pred_fallthru
      _
    // Predicated region
    $region14: #{tpu_custom_call.1} parent=1 // pred_check
      _
    $region15: #{tpu_custom_call.1} parent=1 // pred_check_branch
      %40 = sbr.rel (0) target = $region17
    $region16: #{tpu_custom_call.1} parent=1 // pred_region
      _
    $region17: #{tpu_custom_call.1} parent=1 // pred_fallthru
      _
    // Predicated region
    $region18: #{tpu_custom_call.1} parent=1 // pred_check
      _
    $region19: #{tpu_custom_call.1} parent=1 // pred_check_branch
      %42 = sbr.rel (0) target = $region21
    $region20: #{tpu_custom_call.1} parent=1 // pred_region
      _
    $region21: #{tpu_custom_call.1} parent=1 // pred_fallthru
      _
    // Predicated region
    $region22: #{tpu_custom_call.1} parent=1 // pred_check
      _
    $region23: #{tpu_custom_call.1} parent=1 // pred_check_branch
      %44 = sbr.rel (0) target = $region25
    $region24: #{tpu_custom_call.1} parent=1 // pred_region
      %45 = dma.done [#allocation3], 256
    $region25: #{tpu_custom_call.1} parent=1 // pred_fallthru
      _
    // Predicated region
    $region26: #{tpu_custom_call.1} parent=1 // pred_check
      _
    $region27: #{tpu_custom_call.1} parent=1 // pred_check_branch
      %47 = sbr.rel (0) target = $region29
    $region28: #{tpu_custom_call.1} parent=1 // pred_region
      %48 = dma.done [#allocation6], 2048
    $region29: #{tpu_custom_call.1} parent=1 // pred_fallthru
      _
    %v49 = vld [vmem:[#allocation2] sm:$0xff]
    %v50 = vld [vmem:[#allocation2 + $0x8] sm:$0xff]
    %v51 = vld [vmem:[#allocation5] sm:$0xff]
    %v52 = vld [vmem:[#allocation5 + $0x8] sm:$0xff]
    %v53 = vld [vmem:[#allocation5 + $0x10] sm:$0xff]
    %v54 = vld [vmem:[#allocation5 + $0x18] sm:$0xff]
    %v55 = vld [vmem:[#allocation5 + $0x20] sm:$0xff]
    %v56 = vld [vmem:[#allocation5 + $0x28] sm:$0xff]
    %v57 = vld [vmem:[#allocation5 + $0x30] sm:$0xff]
    %v58 = vld [vmem:[#allocation5 + $0x38] sm:$0xff]
    %v59 = vld [vmem:[#allocation5 + $0x40] sm:$0xff]
    %v60 = vld [vmem:[#allocation5 + $0x48] sm:$0xff]
    %v61 = vld [vmem:[#allocation5 + $0x50] sm:$0xff]
    %v62 = vld [vmem:[#allocation5 + $0x58] sm:$0xff]
    %v63 = vld [vmem:[#allocation5 + $0x60] sm:$0xff]
    %v64 = vld [vmem:[#allocation5 + $0x68] sm:$0xff]
    %v65 = vld [vmem:[#allocation5 + $0x70] sm:$0xff]
    %v66 = vld [vmem:[#allocation5 + $0x78] sm:$0xff]
    %v67 = vld [vmem:[%s2] sm:$0x1]
    %v69 = vlaneseq
    %v70 = vshrl.u32 %v69, 7
    %v71 = vsub.s32 0, %v70
    %v72 = vrot.slane %v67, %v71
    %74 = vmatprep.subr.mxu0 0.0
    %75 = vmatpush1.msra.mxu0 %v66
    %76 = vmatprep.subr.mxu0 0.0
    %77 = vmatpush1.msra.mxu0 %v65
    %78 = vmatprep.subr.mxu0 0.0
    %79 = vmatpush1.msra.mxu0 %v64
    %80 = vmatprep.subr.mxu0 0.0
    %81 = vmatpush1.msra.mxu0 %v63
    %82 = vmatprep.subr.mxu0 0.0
    %83 = vmatpush1.msra.mxu0 %v62
    %84 = vmatprep.subr.mxu0 0.0
    %85 = vmatpush1.msra.mxu0 %v61
    %86 = vmatprep.subr.mxu0 0.0
    %87 = vmatpush1.msra.mxu0 %v60
    %88 = vmatprep.subr.mxu0 0.0
    %89 = vmatpush1.msra.mxu0 %v59
    %90 = vmatprep.subr.mxu0 0.0
    %91 = vmatpush1.msra.mxu0 %v58
    %92 = vmatprep.subr.mxu0 0.0
    %93 = vmatpush1.msra.mxu0 %v57
    %94 = vmatprep.subr.mxu0 0.0
    %95 = vmatpush1.msra.mxu0 %v56
    %96 = vmatprep.subr.mxu0 0.0
    %97 = vmatpush1.msra.mxu0 %v55
    %98 = vmatprep.subr.mxu0 0.0
    %99 = vmatpush1.msra.mxu0 %v54
    %100 = vmatprep.subr.mxu0 0.0
    %101 = vmatpush1.msra.mxu0 %v53
    %102 = vmatprep.subr.mxu0 0.0
    %103 = vmatpush1.msra.mxu0 %v52
    %104 = vmatprep.subr.mxu0 0.0
    %105 = vmatpush1.msra.mxu0 %v51
    %106 = vmatprep.subr.mxu0 0.0
    %107 = vmatpush2.msra.mxu0 0.0
    %108 = vmatprep.subr.mxu0 0.0
    %109 = vmatpush2.msra.mxu0 0.0
    %110 = vmatprep.subr.mxu0 0.0
    %111 = vmatpush2.msra.mxu0 0.0
    %112 = vmatprep.subr.mxu0 0.0
    %113 = vmatpush2.msra.mxu0 0.0
    %114 = vmatprep.subr.mxu0 0.0
    %115 = vmatpush2.msra.mxu0 0.0
    %116 = vmatprep.subr.mxu0 0.0
    %117 = vmatpush2.msra.mxu0 0.0
    %118 = vmatprep.subr.mxu0 0.0
    %119 = vmatpush2.msra.mxu0 0.0
    %120 = vmatprep.subr.mxu0 0.0
    %121 = vmatpush2.msra.mxu0 0.0
    %122 = vmatprep.subr.mxu0 0.0
    %123 = vmatpush2.msra.mxu0 0.0
    %124 = vmatprep.subr.mxu0 0.0
    %125 = vmatpush2.msra.mxu0 0.0
    %126 = vmatprep.subr.mxu0 0.0
    %127 = vmatpush2.msra.mxu0 0.0
    %128 = vmatprep.subr.mxu0 0.0
    %129 = vmatpush2.msra.mxu0 0.0
    %130 = vmatprep.subr.mxu0 0.0
    %131 = vmatpush2.msra.mxu0 0.0
    %132 = vmatprep.subr.mxu0 0.0
    %133 = vmatpush2.msra.mxu0 0.0
    %134 = vmatprep.subr.mxu0 0.0
    %135 = vmatpush2.msra.mxu0 0.0
    %136 = vmatprep.subr.mxu0 0.0
    %137 = vmatpush2.msra.mxu0 0.0
    %138 = vmatprep.mubr.f32.mxu0 0.0
    %139 = vmatmul.mubr.f32.gmra.mxu0 %v49
    %v140 = vpop.f32.mrf.mxu0
    %v141 = vadd.f32 %v72, %v140
    %v142 = vpop.f32.mrf.mxu0
    %143 = vmatprep.mubr.f32.mxu0 0.0
    %144 = vmatmul.mubr.f32.gmra.mxu0 %v50
    %v145 = vpop.f32.mrf.mxu0
    %v146 = vadd.f32 %v72, %v145
    %v147 = vpop.f32.mrf.mxu0
    %148 = vdwg.mxu0
    %149 = vadd.xlane.f32.xlu0 %v141
    %v150 = vpop.xlane.xlu0 %149
    %151 = vadd.xlane.f32.xlu0 %v146
    %v152 = vpop.xlane.xlu0 %151
    %v153 = vrcp.pop 128.0
    %v154 = vmul.f32 %v150, %v153
    %v155 = vmul.f32 %v152, %v153
    %v156 = vsub.f32 %v141, %v154
    %v157 = vsub.f32 %v146, %v155
    %v158 = vmul.f32 %v156, %v156
    %v159 = vmul.f32 %v157, %v157
    %160 = vadd.xlane.f32.xlu0 %v158
    %v161 = vpop.xlane.xlu0 %160
    %162 = vadd.xlane.f32.xlu0 %v159
    %v163 = vpop.xlane.xlu0 %162
    %v164 = vmul.f32 %v161, 0.007874016
    %v165 = vmul.f32 %v163, 0.007874016
    %v166 = vrsqrt.pop %v164
    %v167 = vmul.f32 %v164, %v166
    %vm168 = vcmp.eq.f32.partialorder %v164, inf
    %v169 = vsel %vm168, %v164, %v167
    %vm170 = vcmp.eq.f32.partialorder %v164, 0.0
    %v171 = vand.u32 %v164, 2147483648
    %v172 = vsel %vm170, %v171, %v169
    %v173 = vrsqrt.pop %v165
    %v174 = vmul.f32 %v165, %v173
    %vm175 = vcmp.eq.f32.partialorder %v165, inf
    %v176 = vsel %vm175, %v165, %v174
    %vm177 = vcmp.eq.f32.partialorder %v165, 0.0
    %v178 = vand.u32 %v165, 2147483648
    %v179 = vsel %vm177, %v178, %v176
    %v180 = vadd.f32 %v172, 1e-07
    %v181 = vadd.f32 %v179, 1e-07
    %v182 = vrcp.pop %v180
    %v183 = vmul.f32 1.0, %v182
    %v184 = vrcp.pop %v181
    %v185 = vmul.f32 1.0, %v184
    %v186 = vmul.f32 %v156, %v183
    %v187 = vmul.f32 %v157, %v185
    %v188 = vld [vmem:[%s3] sm:$0x1]
    %v190 = vlaneseq
    %v191 = vshrl.u32 %v190, 7
    %v192 = vsub.s32 0, %v191
    %v193 = vrot.slane %v188, %v192
    %v195 = vmul.f32 %v186, %v193
    %v196 = vmul.f32 %v187, %v193
    %v197 = vld [vmem:[%s4] sm:$0x1]
    %v199 = vlaneseq
    %v200 = vshrl.u32 %v199, 7
    %v201 = vsub.s32 0, %v200
    %v202 = vrot.slane %v197, %v201
    %v204 = vadd.f32 %v195, %v202
    %v205 = vadd.f32 %v196, %v202
    %v206 = vadd.f32 %v49, %v204
    %v207 = vadd.f32 %v50, %v205
    %208 = vst [vmem:[#allocation7] sm:$0xff] %v206
    %209 = vst [vmem:[#allocation7 + $0x8] sm:$0xff] %v207
    // Predicated region
    $region30: #{tpu_custom_call.1} parent=1 // pred_check
      _
    $region31: #{tpu_custom_call.1} parent=1 // pred_check_branch
      %211 = sbr.rel (0) target = $region33
    $region32: #{tpu_custom_call.1} parent=1 // pred_region
      %s213 = ssub.s32 256, 256
      %214 = vsyncadd [#allocation4], %s213
      %s215 = sshll.u32 [#allocation7], 4
      %s216 = int_to_ptr.vmem [resolvable:$true] %s215
      %221 = dma.vmem_to_hbm [thread:$0]  %s216, 256, %s5, [#allocation4], 128, 128, 8
    $region33: #{tpu_custom_call.1} parent=1 // pred_fallthru
      _
    // Predicated region
    $region34: #{tpu_custom_call.1} parent=1 // pred_check
      _
    $region35: #{tpu_custom_call.1} parent=1 // pred_check_branch
      %223 = sbr.rel (0) target = $region37
    $region36: #{tpu_custom_call.1} parent=1 // pred_region
      %224 = dma.done [#allocation4], 256
    $region37: #{tpu_custom_call.1} parent=1 // pred_fallthru
      _
    %225 = vsyncpa [#allocation3], 1
    %226 = vsyncpa [#allocation6], 1
    %227 = vsyncpa [#allocation4], 1

</llo_original>
